<compile_context>
chip_gen: v6e
topology: v6e:2x2x1
jax: 0.10.0
libtpu: 0.0.40
codegen_flags: <defaults>
</compile_context>

<pallas_src>
import jax
import jax.numpy as jnp
from jax.experimental import pallas as pl
from jax.experimental.pallas import tpu as pltpu

SUBLANE = 8


def actor_kernel(x_ref, w1_ref, b1_ref, w2_ref, b2_ref, o_ref):
    # x_ref:  (nS, TILE_B)   VMEM -- batch on the lane axis
    # w1_ref: (Hp, nS)       VMEM -- fc1 weight, transposed
    # b1_ref: (Hp, 1)        VMEM
    # w2_ref: (nAp, Hp)      VMEM -- fc2 weight, transposed, 100x folded in
    # b2_ref: (nAp, 1)       VMEM -- 100x folded in
    # o_ref:  (nAp, TILE_B)  VMEM -- batch stays on lanes for the output store
    h = jnp.dot(w1_ref[...], x_ref[...], preferred_element_type=jnp.float32)
    h = jnp.tanh(h + b1_ref[...])                       # (Hp, TILE_B)
    o_ref[...] = (
        jnp.dot(w2_ref[...], h, preferred_element_type=jnp.float32) + b2_ref[...]
    )


def _round_up(x, m):
    return (x + m - 1) // m * m


def prepare_params(w1, b1, w2, b2):
    """Transpose weights to batch-on-lanes layout, pad hidden/nA only on the
    sublane axis (multiple of 8), and fold the 100x output scale into fc2.
    Pure offline constant folding; zero-padded rows/cols contribute nothing."""
    nS, hidden = w1.shape
    _, nA = w2.shape
    Hp = _round_up(hidden, SUBLANE)
    nAp = _round_up(nA, SUBLANE)
    w1t = jnp.zeros((Hp, nS), jnp.float32).at[:hidden, :].set(w1.T)
    b1t = jnp.zeros((Hp, 1), jnp.float32).at[:hidden, 0].set(b1.reshape(-1))
    w2t = jnp.zeros((nAp, Hp), jnp.float32).at[:nA, :hidden].set(100.0 * w2.T)
    b2t = jnp.zeros((nAp, 1), jnp.float32).at[:nA, 0].set(100.0 * b2.reshape(-1))
    return w1t, b1t, w2t, b2t


def actor_forward(state, w1t, b1t, w2t, b2t, nA, tile_b=None):
    """state: (nS, B) float32 -> (B, nA) float32 (matches PyTorch Actor.forward)."""
    nS, B = state.shape
    Hp = w1t.shape[0]
    nAp = w2t.shape[0]

    if tile_b is None:
        # Large tiles amortize per-grid-step overhead; cap keeps VMEM tiny.
        # On v7x, prefer tile_b ~= round_up(B/2, 128) so both TensorCores get a tile.
        tile_b = B if B <= 4096 else 4096

    # Pad B up to a multiple of tile_b so no tile reads past the end of `state`.
    Bp = _round_up(B, tile_b)
    if Bp != B:
        state = jnp.pad(state, ((0, 0), (0, Bp - B)))
    grid = (Bp // tile_b,)

    # Rough per-step VMEM footprint (double-buffered x/out + resident weights + h);
    # only pin the scoped-VMEM limit if we are near the v5e 16 MiB default.
    est_bytes = (
        2 * (nS * tile_b + nAp * tile_b) * 4   # double-buffered input/output tiles
        + Hp * tile_b * 4                      # h intermediate
        + (Hp * nS + Hp + nAp * Hp + nAp) * 4  # resident weights/biases
    )
    vmem_limit = 2 * est_bytes if est_bytes > 12 * 1024 * 1024 else None

    out_padded = pl.pallas_call(
        actor_kernel,
        out_shape=jax.ShapeDtypeStruct((nAp, Bp), jnp.float32),
        grid_spec=pltpu.PrefetchScalarGridSpec(
            num_scalar_prefetch=0,
            grid=grid,
            in_specs=[
                pl.BlockSpec((nS, tile_b), lambda i: (0, i)),   # batch tile of x
                pl.BlockSpec((Hp, nS),     lambda i: (0, 0)),   # weights stay resident
                pl.BlockSpec((Hp, 1),      lambda i: (0, 0)),
                pl.BlockSpec((nAp, Hp),    lambda i: (0, 0)),
                pl.BlockSpec((nAp, 1),     lambda i: (0, 0)),
            ],
            out_specs=pl.BlockSpec((nAp, tile_b), lambda i: (0, i)),
        ),
        compiler_params=pltpu.CompilerParams(
            # batch tiles are independent -> shard across TensorCores on v7x
            dimension_semantics=("parallel",),
            vmem_limit_bytes=vmem_limit,
        ),
    )(state, w1t, b1t, w2t, b2t)

    # Tiny (nA, B) slice of an (8, Bp) buffer + transpose back to PyTorch layout.
    return out_padded[:nA, :B].T


def xavier_uniform(key, fan_in, fan_out):
    # matches torch.nn.init.xavier_uniform_ with gain=1; stored (in, out)
    limit = jnp.sqrt(6.0 / (fan_in + fan_out))
    return jax.random.uniform(key, (fan_in, fan_out), jnp.float32, -limit, limit)


def linear_bias(key, fan_in, fan_out):
    # torch nn.Linear default bias init: U(-1/sqrt(fan_in), 1/sqrt(fan_in))
    limit = 1.0 / jnp.sqrt(jnp.float32(fan_in))
    return jax.random.uniform(key, (1, fan_out), jnp.float32, -limit, limit)


if __name__ == "__main__":
    nS, nA, hidden = 16, 4, 50
    B = 8

    key = jax.random.PRNGKey(0)
    k1, k2, k3, k4, k5 = jax.random.split(key, 5)

    # Original (unpadded, unscaled) parameters — the reference uses these.
    w1 = xavier_uniform(k1, nS, hidden)          # (nS, hidden)
    b1 = linear_bias(k2, nS, hidden)             # (1, hidden)
    w2 = xavier_uniform(k3, hidden, nA)          # (hidden, nA)
    b2 = linear_bias(k4, hidden, nA)             # (1, nA)

    state = jax.random.normal(k5, (nS, B), jnp.float32)   # PyTorch-style (nS, B)

    # Offline prep: transpose to batch-on-lanes layout, sublane padding, 100x fold.
    w1t, b1t, w2t, b2t = prepare_params(w1, b1, w2, b2)

    out = actor_forward(state, w1t, b1t, w2t, b2t, nA)
    out = jax.block_until_ready(out)

    # Reference check in plain JAX against the original formulation.
    ref = 100.0 * (jnp.tanh(state.T @ w1 + b1) @ w2 + b2)
    assert out.shape == (B, nA)
    assert jnp.allclose(out, ref, atol=1e-2, rtol=1e-3), float(jnp.max(jnp.abs(out - ref)))

    print("KERNEL_OK")
</pallas_src>

<mosaic_0001>
module attributes {stable_mosaic.version = 11 : i64} {
  func.func @actor_kernel(%arg0: i32, %arg1: memref<16x8xf32, #tpu.memory_space<vmem>>, %arg2: memref<56x16xf32, #tpu.memory_space<vmem>>, %arg3: memref<56x1xf32, #tpu.memory_space<vmem>>, %arg4: memref<8x56xf32, #tpu.memory_space<vmem>>, %arg5: memref<8x1xf32, #tpu.memory_space<vmem>>, %arg6: memref<8x8xf32, #tpu.memory_space<vmem>>) attributes {dimension_semantics = [#tpu.dimension_semantics<parallel>], iteration_bounds = array<i64: 1>, scalar_prefetch = 0 : i64, scratch_operands = 0 : i64, tpu.core_type = #tpu.core_type<tc>, window_params = [{transform_indices = @transform_0, window_bounds = array<i64: 16, 8>}, {pipeline_mode = #tpu.pipeline_mode<synchronous>, transform_indices = @transform_1, window_bounds = array<i64: 56, 16>}, {pipeline_mode = #tpu.pipeline_mode<synchronous>, transform_indices = @transform_2, window_bounds = array<i64: 56, 1>}, {pipeline_mode = #tpu.pipeline_mode<synchronous>, transform_indices = @transform_3, window_bounds = array<i64: 8, 56>}, {pipeline_mode = #tpu.pipeline_mode<synchronous>, transform_indices = @transform_4, window_bounds = array<i64: 8, 1>}, {transform_indices = @transform_5, window_bounds = array<i64: 8, 8>}]} {
    %c0 = arith.constant 0 : index
    %c0_0 = arith.constant 0 : index
    %0 = vector.load %arg2[%c0, %c0_0] : memref<56x16xf32, #tpu.memory_space<vmem>>, vector<56x16xf32>
    %c0_1 = arith.constant 0 : index
    %c0_2 = arith.constant 0 : index
    %1 = vector.load %arg1[%c0_1, %c0_2] : memref<16x8xf32, #tpu.memory_space<vmem>>, vector<16x8xf32>
    %cst = arith.constant dense<0.000000e+00> : vector<56x8xf32>
    %2 = tpu.matmul %0, %1, %cst {dimension_numbers = #tpu.dot_dimension_numbers<[1], [0], [0], [1], [0, 0, 1, 1], [], []>} : vector<56x16xf32>, vector<16x8xf32>, vector<56x8xf32> -> vector<56x8xf32>
    %c0_3 = arith.constant 0 : index
    %c0_4 = arith.constant 0 : index
    %3 = vector.load %arg3[%c0_3, %c0_4] : memref<56x1xf32, #tpu.memory_space<vmem>>, vector<56x1xf32>
    %4 = vector.broadcast %3 : vector<56x1xf32> to vector<56x8xf32>
    %5 = arith.addf %2, %4 : vector<56x8xf32>
    %6 = math.tanh %5 : vector<56x8xf32>
    %c0_5 = arith.constant 0 : index
    %c0_6 = arith.constant 0 : index
    %7 = vector.load %arg4[%c0_5, %c0_6] : memref<8x56xf32, #tpu.memory_space<vmem>>, vector<8x56xf32>
    %cst_7 = arith.constant dense<0.000000e+00> : vector<8x8xf32>
    %8 = tpu.matmul %7, %6, %cst_7 {dimension_numbers = #tpu.dot_dimension_numbers<[1], [0], [0], [1], [0, 0, 1, 1], [], []>} : vector<8x56xf32>, vector<56x8xf32>, vector<8x8xf32> -> vector<8x8xf32>
    %c0_8 = arith.constant 0 : index
    %c0_9 = arith.constant 0 : index
    %9 = vector.load %arg5[%c0_8, %c0_9] : memref<8x1xf32, #tpu.memory_space<vmem>>, vector<8x1xf32>
    %10 = vector.broadcast %9 : vector<8x1xf32> to vector<8x8xf32>
    %11 = arith.addf %8, %10 : vector<8x8xf32>
    %c0_10 = arith.constant 0 : index
    %c0_11 = arith.constant 0 : index
    %12 = vector.load %arg6[%c0_10, %c0_11] : memref<8x8xf32, #tpu.memory_space<vmem>>, vector<8x8xf32>
    tpu.vector_store %arg6[%c0_10, %c0_11], %11 {strides = array<i32>} : memref<8x8xf32, #tpu.memory_space<vmem>>, vector<8x8xf32>,
    return
  }
  func.func @transform_0(%arg0: i32) -> (i32, i32) {
    %c0_i32 = arith.constant 0 : i32
    %c0_i32_0 = arith.constant 0 : i32
    return %c0_i32, %arg0 : i32, i32
  }
  func.func @transform_1(%arg0: i32) -> (i32, i32) {
    %c0_i32 = arith.constant 0 : i32
    %c0_i32_0 = arith.constant 0 : i32
    %c0_i32_1 = arith.constant 0 : i32
    return %c0_i32, %c0_i32_0 : i32, i32
  }
  func.func @transform_2(%arg0: i32) -> (i32, i32) {
    %c0_i32 = arith.constant 0 : i32
    %c0_i32_0 = arith.constant 0 : i32
    %c0_i32_1 = arith.constant 0 : i32
    return %c0_i32, %c0_i32_0 : i32, i32
  }
  func.func @transform_3(%arg0: i32) -> (i32, i32) {
    %c0_i32 = arith.constant 0 : i32
    %c0_i32_0 = arith.constant 0 : i32
    %c0_i32_1 = arith.constant 0 : i32
    return %c0_i32, %c0_i32_0 : i32, i32
  }
  func.func @transform_4(%arg0: i32) -> (i32, i32) {
    %c0_i32 = arith.constant 0 : i32
    %c0_i32_0 = arith.constant 0 : i32
    %c0_i32_1 = arith.constant 0 : i32
    return %c0_i32, %c0_i32_0 : i32, i32
  }
  func.func @transform_5(%arg0: i32) -> (i32, i32) {
    %c0_i32 = arith.constant 0 : i32
    %c0_i32_0 = arith.constant 0 : i32
    return %c0_i32, %arg0 : i32, i32
  }
}

</mosaic_0001>

<llo_original>
// kernel: tpu_custom_call.1
$region0: #{tpu_custom_call.1}
  #allocation0 [shape = 'u32[]', space=smem, size = 0x4, offset = 0x4, fixed_abs, tag = 'smem constant byte address 0x4 - core index']
  #allocation1 [shape = 'u32[144,128]{1,0:T(1,128)}', space=vmem, size = 0x12000, scoped, tag = 'internal scratch']
  %s0 = inlined_call_operand.vmem [shape: f32[16,8], index: 0, kind: input, shape index: {}]
  %s1 = inlined_call_operand.vmem [shape: f32[56,16], index: 1, kind: input, shape index: {}]
  %s2 = inlined_call_operand.vmem [shape: f32[56,1], index: 2, kind: input, shape index: {}]
  %s3 = inlined_call_operand.vmem [shape: f32[8,56], index: 3, kind: input, shape index: {}]
  %s4 = inlined_call_operand.vmem [shape: f32[8,1], index: 4, kind: input, shape index: {}]
  %s5 = inlined_call_operand.hbm [shape: f32[8,8], index: 5, kind: output, shape index: {}]
  %s6 = sld [smem:[#allocation0]]
  $region30: #{tpu_custom_call.1} parent=0
    _
  %s8 = ssub.s32 1, %s6
  %s9 = scalar_select 0, %s8, %s6
  $region1: #{tpu_custom_call.1} parent=0
    #allocation2 [shape = 'u8[4096]{0}', space=vmem, size = 0x1000, scoped, tag = 'output window, operand 0, single buffered']
    #allocation3 [shape = 's32[1]{0}', space=sflag, size = 0x4, scoped, tag = 'scoped memory for tpu_custom_call.1']
    %10 = vsyncpa [#allocation3], 0
    // Predicated region
    $region2: #{tpu_custom_call.1} parent=1 // pred_check
      _
    $region3: #{tpu_custom_call.1} parent=1 // pred_check_branch
      %12 = sbr.rel (0) target = $region5
    $region4: #{tpu_custom_call.1} parent=1 // pred_region
      _
    $region5: #{tpu_custom_call.1} parent=1 // pred_fallthru
      _
    // Predicated region
    $region6: #{tpu_custom_call.1} parent=1 // pred_check
      _
    $region7: #{tpu_custom_call.1} parent=1 // pred_check_branch
      %14 = sbr.rel (0) target = $region9
    $region8: #{tpu_custom_call.1} parent=1 // pred_region
      _
    $region9: #{tpu_custom_call.1} parent=1 // pred_fallthru
      _
    // Predicated region
    $region10: #{tpu_custom_call.1} parent=1 // pred_check
      _
    $region11: #{tpu_custom_call.1} parent=1 // pred_check_branch
      %16 = sbr.rel (0) target = $region13
    $region12: #{tpu_custom_call.1} parent=1 // pred_region
      _
    $region13: #{tpu_custom_call.1} parent=1 // pred_fallthru
      _
    // Predicated region
    $region14: #{tpu_custom_call.1} parent=1 // pred_check
      _
    $region15: #{tpu_custom_call.1} parent=1 // pred_check_branch
      %18 = sbr.rel (0) target = $region17
    $region16: #{tpu_custom_call.1} parent=1 // pred_region
      _
    $region17: #{tpu_custom_call.1} parent=1 // pred_fallthru
      _
    // Predicated region
    $region18: #{tpu_custom_call.1} parent=1 // pred_check
      _
    $region19: #{tpu_custom_call.1} parent=1 // pred_check_branch
      %20 = sbr.rel (0) target = $region21
    $region20: #{tpu_custom_call.1} parent=1 // pred_region
      _
    $region21: #{tpu_custom_call.1} parent=1 // pred_fallthru
      _
    %v21 = vld [vmem:[%s1] sm:$0xff]
    %v22 = vld [vmem:[%s1 + $0x8] sm:$0xff]
    %v23 = vld [vmem:[%s1 + $0x10] sm:$0xff]
    %v24 = vld [vmem:[%s1 + $0x18] sm:$0xff]
    %v25 = vld [vmem:[%s1 + $0x20] sm:$0xff]
    %v26 = vld [vmem:[%s1 + $0x28] sm:$0xff]
    %v27 = vld [vmem:[%s1 + $0x30] sm:$0xff]
    %v28 = vld [vmem:[%s0] sm:$0xff]
    %v29 = vld [vmem:[%s0 + $0x8] sm:$0xff]
    %v30 = vld [vmem:[%s2] sm:$0xff]
    %v31 = vld [vmem:[%s2 + $0x8] sm:$0xff]
    %v32 = vld [vmem:[%s2 + $0x10] sm:$0xff]
    %v33 = vld [vmem:[%s2 + $0x18] sm:$0xff]
    %v34 = vld [vmem:[%s2 + $0x20] sm:$0xff]
    %v35 = vld [vmem:[%s2 + $0x28] sm:$0xff]
    %v36 = vld [vmem:[%s2 + $0x30] sm:$0xff]
    %38 = vset.pattern.permute.xlu0 0
    %39 = vperm.xlu0 %38, %v30
    %v40 = vpop.permute.xlu0 %39
    %43 = vset.pattern.permute.xlu0 0
    %44 = vperm.xlu0 %43, %v31
    %v45 = vpop.permute.xlu0 %44
    %48 = vset.pattern.permute.xlu0 0
    %49 = vperm.xlu0 %48, %v32
    %v50 = vpop.permute.xlu0 %49
    %53 = vset.pattern.permute.xlu0 0
    %54 = vperm.xlu0 %53, %v33
    %v55 = vpop.permute.xlu0 %54
    %58 = vset.pattern.permute.xlu0 0
    %59 = vperm.xlu0 %58, %v34
    %v60 = vpop.permute.xlu0 %59
    %63 = vset.pattern.permute.xlu0 0
    %64 = vperm.xlu0 %63, %v35
    %v65 = vpop.permute.xlu0 %64
    %68 = vset.pattern.permute.xlu0 0
    %69 = vperm.xlu0 %68, %v36
    %v70 = vpop.permute.xlu0 %69
    %vm72 = vcmask 130048
    %v74 = vsel %vm72, %v21, 0
    %v77 = vsel %vm72, %v22, 0
    %v80 = vsel %vm72, %v23, 0
    %v83 = vsel %vm72, %v24, 0
    %v86 = vsel %vm72, %v25, 0
    %v89 = vsel %vm72, %v26, 0
    %v92 = vsel %vm72, %v27, 0
    %94 = vmatprep.subr.mxu0 0.0
    %95 = vmatpush1.msra.mxu0 0.0
    %96 = vmatprep.subr.mxu0 0.0
    %97 = vmatpush1.msra.mxu0 0.0
    %98 = vmatprep.subr.mxu0 0.0
    %99 = vmatpush1.msra.mxu0 0.0
    %100 = vmatprep.subr.mxu0 0.0
    %101 = vmatpush1.msra.mxu0 0.0
    %102 = vmatprep.subr.mxu0 0.0
    %103 = vmatpush1.msra.mxu0 0.0
    %104 = vmatprep.subr.mxu0 0.0
    %105 = vmatpush1.msra.mxu0 0.0
    %106 = vmatprep.subr.mxu0 0.0
    %107 = vmatpush1.msra.mxu0 0.0
    %108 = vmatprep.subr.mxu0 0.0
    %109 = vmatpush1.msra.mxu0 0.0
    %110 = vmatprep.subr.mxu0 0.0
    %111 = vmatpush1.msra.mxu0 0.0
    %112 = vmatprep.subr.mxu0 0.0
    %113 = vmatpush1.msra.mxu0 0.0
    %114 = vmatprep.subr.mxu0 0.0
    %115 = vmatpush1.msra.mxu0 0.0
    %116 = vmatprep.subr.mxu0 0.0
    %117 = vmatpush1.msra.mxu0 0.0
    %118 = vmatprep.subr.mxu0 0.0
    %119 = vmatpush1.msra.mxu0 0.0
    %120 = vmatprep.subr.mxu0 0.0
    %121 = vmatpush1.msra.mxu0 0.0
    %122 = vmatprep.subr.mxu0 0.0
    %123 = vmatpush1.msra.mxu0 %v29
    %124 = vmatprep.subr.mxu0 0.0
    %125 = vmatpush1.msra.mxu0 %v28
    %126 = vmatprep.subr.mxu0 0.0
    %127 = vmatpush2.msra.mxu0 0.0
    %128 = vmatprep.subr.mxu0 0.0
    %129 = vmatpush2.msra.mxu0 0.0
    %130 = vmatprep.subr.mxu0 0.0
    %131 = vmatpush2.msra.mxu0 0.0
    %132 = vmatprep.subr.mxu0 0.0
    %133 = vmatpush2.msra.mxu0 0.0
    %134 = vmatprep.subr.mxu0 0.0
    %135 = vmatpush2.msra.mxu0 0.0
    %136 = vmatprep.subr.mxu0 0.0
    %137 = vmatpush2.msra.mxu0 0.0
    %138 = vmatprep.subr.mxu0 0.0
    %139 = vmatpush2.msra.mxu0 0.0
    %140 = vmatprep.subr.mxu0 0.0
    %141 = vmatpush2.msra.mxu0 0.0
    %142 = vmatprep.subr.mxu0 0.0
    %143 = vmatpush2.msra.mxu0 0.0
    %144 = vmatprep.subr.mxu0 0.0
    %145 = vmatpush2.msra.mxu0 0.0
    %146 = vmatprep.subr.mxu0 0.0
    %147 = vmatpush2.msra.mxu0 0.0
    %148 = vmatprep.subr.mxu0 0.0
    %149 = vmatpush2.msra.mxu0 0.0
    %150 = vmatprep.subr.mxu0 0.0
    %151 = vmatpush2.msra.mxu0 0.0
    %152 = vmatprep.subr.mxu0 0.0
    %153 = vmatpush2.msra.mxu0 0.0
    %154 = vmatprep.subr.mxu0 0.0
    %155 = vmatpush2.msra.mxu0 0.0
    %156 = vmatprep.subr.mxu0 0.0
    %157 = vmatpush2.msra.mxu0 0.0
    %158 = vmatprep.mubr.f32.mxu0 0.0
    %159 = vmatmul.mubr.f32.gmra.mxu0 %v74
    %v160 = vpop.f32.mrf.mxu0
    %v161 = vadd.f32 %v40, %v160
    %v162 = vpop.f32.mrf.mxu0
    %163 = vmatprep.mubr.f32.mxu0 0.0
    %164 = vmatmul.mubr.f32.gmra.mxu0 %v77
    %v165 = vpop.f32.mrf.mxu0
    %v166 = vadd.f32 %v45, %v165
    %v167 = vpop.f32.mrf.mxu0
    %168 = vmatprep.mubr.f32.mxu0 0.0
    %169 = vmatmul.mubr.f32.gmra.mxu0 %v80
    %v170 = vpop.f32.mrf.mxu0
    %v171 = vadd.f32 %v50, %v170
    %v172 = vpop.f32.mrf.mxu0
    %173 = vmatprep.mubr.f32.mxu0 0.0
    %174 = vmatmul.mubr.f32.gmra.mxu0 %v83
    %v175 = vpop.f32.mrf.mxu0
    %v176 = vadd.f32 %v55, %v175
    %v177 = vpop.f32.mrf.mxu0
    %178 = vmatprep.mubr.f32.mxu0 0.0
    %179 = vmatmul.mubr.f32.gmra.mxu0 %v86
    %v180 = vpop.f32.mrf.mxu0
    %v181 = vadd.f32 %v60, %v180
    %v182 = vpop.f32.mrf.mxu0
    %183 = vmatprep.mubr.f32.mxu0 0.0
    %184 = vmatmul.mubr.f32.gmra.mxu0 %v89
    %v185 = vpop.f32.mrf.mxu0
    %v186 = vadd.f32 %v65, %v185
    %v187 = vpop.f32.mrf.mxu0
    %188 = vmatprep.mubr.f32.mxu0 0.0
    %189 = vmatmul.mubr.f32.gmra.mxu0 %v92
    %v190 = vpop.f32.mrf.mxu0
    %v191 = vadd.f32 %v70, %v190
    %v192 = vpop.f32.mrf.mxu0
    %193 = vdwg.mxu0
    %v194 = vtanh.pop %v161
    %v195 = vtanh.pop %v166
    %v196 = vtanh.pop %v171
    %v197 = vtanh.pop %v176
    %v198 = vtanh.pop %v181
    %v199 = vtanh.pop %v186
    %v200 = vtanh.pop %v191
    %v201 = vld [vmem:[%s3] sm:$0xff]
    %v202 = vld [vmem:[%s4] sm:$0xff]
    %204 = vset.pattern.permute.xlu0 0
    %205 = vperm.xlu0 %204, %v202
    %v206 = vpop.permute.xlu0 %205
    %vm208 = vcmask 457728
    %v210 = vsel %vm208, %v201, 0
    %212 = vmatprep.subr.mxu0 0.0
    %213 = vmatpush1.msra.mxu0 0.0
    %214 = vmatprep.subr.mxu0 0.0
    %215 = vmatpush1.msra.mxu0 0.0
    %216 = vmatprep.subr.mxu0 0.0
    %217 = vmatpush1.msra.mxu0 0.0
    %218 = vmatprep.subr.mxu0 0.0
    %219 = vmatpush1.msra.mxu0 0.0
    %220 = vmatprep.subr.mxu0 0.0
    %221 = vmatpush1.msra.mxu0 0.0
    %222 = vmatprep.subr.mxu0 0.0
    %223 = vmatpush1.msra.mxu0 0.0
    %224 = vmatprep.subr.mxu0 0.0
    %225 = vmatpush1.msra.mxu0 0.0
    %226 = vmatprep.subr.mxu0 0.0
    %227 = vmatpush1.msra.mxu0 0.0
    %228 = vmatprep.subr.mxu0 0.0
    %229 = vmatpush1.msra.mxu0 0.0
    %230 = vmatprep.subr.mxu0 0.0
    %231 = vmatpush1.msra.mxu0 %v200
    %232 = vmatprep.subr.mxu0 0.0
    %233 = vmatpush1.msra.mxu0 %v199
    %234 = vmatprep.subr.mxu0 0.0
    %235 = vmatpush1.msra.mxu0 %v198
    %236 = vmatprep.subr.mxu0 0.0
    %237 = vmatpush1.msra.mxu0 %v197
    %238 = vmatprep.subr.mxu0 0.0
    %239 = vmatpush1.msra.mxu0 %v196
    %240 = vmatprep.subr.mxu0 0.0
    %241 = vmatpush1.msra.mxu0 %v195
    %242 = vmatprep.subr.mxu0 0.0
    %243 = vmatpush1.msra.mxu0 %v194
    %244 = vmatprep.subr.mxu0 0.0
    %245 = vmatpush2.msra.mxu0 0.0
    %246 = vmatprep.subr.mxu0 0.0
    %247 = vmatpush2.msra.mxu0 0.0
    %248 = vmatprep.subr.mxu0 0.0
    %249 = vmatpush2.msra.mxu0 0.0
    %250 = vmatprep.subr.mxu0 0.0
    %251 = vmatpush2.msra.mxu0 0.0
    %252 = vmatprep.subr.mxu0 0.0
    %253 = vmatpush2.msra.mxu0 0.0
    %254 = vmatprep.subr.mxu0 0.0
    %255 = vmatpush2.msra.mxu0 0.0
    %256 = vmatprep.subr.mxu0 0.0
    %257 = vmatpush2.msra.mxu0 0.0
    %258 = vmatprep.subr.mxu0 0.0
    %259 = vmatpush2.msra.mxu0 0.0
    %260 = vmatprep.subr.mxu0 0.0
    %261 = vmatpush2.msra.mxu0 0.0
    %262 = vmatprep.subr.mxu0 0.0
    %263 = vmatpush2.msra.mxu0 0.0
    %264 = vmatprep.subr.mxu0 0.0
    %265 = vmatpush2.msra.mxu0 0.0
    %266 = vmatprep.subr.mxu0 0.0
    %267 = vmatpush2.msra.mxu0 0.0
    %268 = vmatprep.subr.mxu0 0.0
    %269 = vmatpush2.msra.mxu0 0.0
    %270 = vmatprep.subr.mxu0 0.0
    %271 = vmatpush2.msra.mxu0 0.0
    %272 = vmatprep.subr.mxu0 0.0
    %273 = vmatpush2.msra.mxu0 0.0
    %274 = vmatprep.subr.mxu0 0.0
    %275 = vmatpush2.msra.mxu0 0.0
    %276 = vmatprep.mubr.f32.mxu0 0.0
    %277 = vmatmul.mubr.f32.gmra.mxu0 %v210
    %v278 = vpop.f32.mrf.mxu0
    %v279 = vadd.f32 %v206, %v278
    %v280 = vpop.f32.mrf.mxu0
    %281 = vdwg.mxu0
    %vm282 = vcmask 64512
    %283 = vst.msk [vmem:[#allocation2] sm:$0xff] %vm282, %v279
    // Predicated region
    $region22: #{tpu_custom_call.1} parent=1 // pred_check
      _
    $region23: #{tpu_custom_call.1} parent=1 // pred_check_branch
      %285 = sbr.rel (0) target = $region25
    $region24: #{tpu_custom_call.1} parent=1 // pred_region
      %s287 = ssub.s32 128, 128
      %288 = vsyncadd [#allocation3], %s287
      %s290 = sshll.u32 [#allocation2], 4
      %s291 = int_to_ptr.vmem [resolvable:$true] %s290
      %293 = dma.vmem_to_hbm [thread:$0]  %s291, 128, %s5, [#allocation3]
    $region25: #{tpu_custom_call.1} parent=1 // pred_fallthru
      _
    // Predicated region
    $region26: #{tpu_custom_call.1} parent=1 // pred_check
      _
    $region27: #{tpu_custom_call.1} parent=1 // pred_check_branch
      %295 = sbr.rel (0) target = $region29
    $region28: #{tpu_custom_call.1} parent=1 // pred_region
      %296 = dma.done [#allocation3], 128
    $region29: #{tpu_custom_call.1} parent=1 // pred_fallthru
      _
    %297 = vsyncpa [#allocation3], 1

</llo_original>
